<compile_context>
chip_gen: v6e
topology: v6e:2x2x1
jax: 0.10.0
libtpu: 0.0.40
codegen_flags: <defaults>
</compile_context>

<pallas_src>
import math
from functools import partial

import numpy as np
import jax
import jax.numpy as jnp
from jax.experimental import pallas as pl
from jax.experimental.pallas import tpu as pltpu


_WP_CHUNK = 1024  # max lanes of the count slab processed per inner step


def _round_up(x, m):
    return ((x + m - 1) // m) * m


def _per_lane_hash_offsets(embedding_dim, b, chunk, wprime):
    """g(d) = b*(d//chunk) mod W' and d mod chunk (exact, host-side int64)."""
    d = np.arange(embedding_dim, dtype=np.int64)
    g_d = (int(b) * (d // chunk)) % int(wprime)
    d_mod = d % chunk
    return g_d.astype(np.int32), d_mod.astype(np.int32)


# ----------------------------------------------------------------------------
# Pallas kernel: per-bag hashed-row counts -> one MXU contraction against the
# shifted weight view W2.
# ----------------------------------------------------------------------------
def _hashed_bag_kernel(m_ref, w2_ref, o_ref, *, wp_chunk):
    # m_ref:  (TB, BAG) int32  -- hashed table row f(i) in [0, W') per element
    #                            (padded bags carry a large sentinel -> no match)
    # w2_ref: (Wp, D)   f32    -- W2[k, d] = w[(k + g(d)) % W' + d%chunk], 0-padded
    # o_ref:  (TB, D)   f32    -- per-bag summed embeddings (mode='sum')
    tb, bag = m_ref.shape
    wp, d = w2_ref.shape

    m_all = m_ref[...]                                           # (TB, BAG) int32
    m_cols = [m_all[:, l:l + 1] for l in range(bag)]             # (TB, 1) each
    base_iota = jax.lax.broadcasted_iota(jnp.int32, (tb, wp_chunk), 1)

    acc = jnp.zeros((tb, d), jnp.float32)
    # Chunk the hashed-row axis so the live count slab stays bounded (~TB*1024*4B).
    for kc in range(0, wp, wp_chunk):
        k_iota = base_iota + kc                                  # (TB, WPC)
        counts = jnp.zeros((tb, wp_chunk), jnp.float32)
        # TODO(synk): for very large bag_size switch this to lax.fori_loop.
        for l in range(bag):
            counts = counts + (m_cols[l] == k_iota).astype(jnp.float32)
        acc = acc + jnp.dot(counts, w2_ref[kc:kc + wp_chunk, :],
                            preferred_element_type=jnp.float32)
    o_ref[...] = acc


# ----------------------------------------------------------------------------
# Jitted device-side implementation (hash + W2 build + pallas_call).
# ----------------------------------------------------------------------------
@partial(jax.jit, static_argnames=(
    "num_bags", "bag_size", "embedding_dim", "weight_size", "uma_chunk_size",
    "a", "c", "val_offset", "tile_bags"))
def _forward_impl(hashed_weight, flat_indices, g_d, d_mod, *, num_bags, bag_size,
                  embedding_dim, weight_size, uma_chunk_size, a, c, val_offset,
                  tile_bags):
    chunk = uma_chunk_size
    wprime = weight_size - chunk + 1
    D = embedding_dim

    # ---- per-element hashed row f(i) in [0, W'), computed on-device ----------
    idx_u = flat_indices.reshape(-1).astype(jnp.uint32)
    if val_offset is not None:
        idx_u = idx_u + jnp.uint32(val_offset & 0xFFFFFFFF)
    mix = idx_u * jnp.uint32(a) + jnp.uint32(c)                  # uint32 wraparound
    m = (mix % jnp.uint32(wprime)).astype(jnp.int32)
    m = m.reshape(num_bags, bag_size)

    # ---- bag tiling / padding -------------------------------------------------
    tb = min(int(tile_bags), _round_up(num_bags, 8))
    tb = max(8, _round_up(tb, 8))
    nb_pad = _round_up(num_bags, tb)
    if nb_pad != num_bags:
        # sentinel row: never matches any lane -> padded bags produce zeros
        m = jnp.pad(m, ((0, nb_pad - num_bags), (0, 0)), constant_values=2 ** 30)

    # ---- hashed-row lane space / chunking --------------------------------------
    wp = _round_up(wprime, 128)
    if wp > _WP_CHUNK:
        wp = _round_up(wprime, _WP_CHUNK)
    wp_chunk = min(wp, _WP_CHUNK)

    # ---- shifted weight view W2[k, d] = w[(k + g(d)) % W' + d%chunk] -----------
    k = jnp.arange(wp, dtype=jnp.int32)
    col = (k[:, None] + g_d[None, :].astype(jnp.int32)) % jnp.int32(wprime)
    col = col + d_mod[None, :].astype(jnp.int32)                 # (Wp, D) in [0, W)
    w2 = hashed_weight.astype(jnp.float32)[col]                  # XLA gather
    w2 = jnp.where(k[:, None] < wprime, w2, jnp.float32(0.0))    # zero pad rows

    grid = (nb_pad // tb,)
    out = pl.pallas_call(
        partial(_hashed_bag_kernel, wp_chunk=wp_chunk),
        out_shape=jax.ShapeDtypeStruct((nb_pad, D), jnp.float32),
        grid_spec=pltpu.PrefetchScalarGridSpec(
            num_scalar_prefetch=0,
            grid=grid,
            in_specs=[
                pl.BlockSpec((tb, bag_size), lambda i: (i, 0)),   # hashed rows
                pl.BlockSpec((wp, D), lambda i: (0, 0)),          # resident W2
            ],
            out_specs=pl.BlockSpec((tb, D), lambda i: (i, 0)),
        ),
        compiler_params=pltpu.CompilerParams(
            dimension_semantics=("parallel",)),
    )(m, w2)
    return out[:num_bags]


# ----------------------------------------------------------------------------
# Wrapper reproducing HashedEmbeddingBag.forward (mode='sum').
# ----------------------------------------------------------------------------
def hashed_embedding_bag_forward(hashed_weight, random_numbers, indices,
                                 offsets=None, *, embedding_dim,
                                 val_offset=None, uma_chunk_size=1,
                                 tile_bags=256):
    rn = np.asarray(random_numbers).astype(np.int64)
    a = int(rn[1]) & 0xFFFFFFFF
    b = int(rn[2])
    c = int(rn[3]) & 0xFFFFFFFF

    weight_size = int(hashed_weight.shape[0])
    chunk = int(uma_chunk_size)
    wprime = weight_size - chunk + 1

    i_shape = tuple(indices.shape)
    flat = jnp.reshape(jnp.asarray(indices), (-1,)).astype(jnp.int32)
    n = int(flat.shape[0])

    if offsets is None:
        # Module forward: offsets = arange(n) -> every index is its own bag.
        bag_size, num_bags = 1, n
    else:
        # Bag structure defines static output shapes, so it must be host-known.
        off = np.asarray(offsets).astype(np.int64)
        sizes = np.diff(np.concatenate([off, np.array([n], dtype=np.int64)]))
        # TODO(synk): ragged bag sizes not supported by this fixed-shape kernel.
        assert np.all(sizes == sizes[0]), "kernel supports equal-size bags only"
        bag_size = int(sizes[0])
        num_bags = int(off.shape[0])

    g_d, d_mod = _per_lane_hash_offsets(int(embedding_dim), b, chunk, wprime)

    out = _forward_impl(
        hashed_weight, flat, g_d, d_mod,
        num_bags=num_bags, bag_size=bag_size, embedding_dim=int(embedding_dim),
        weight_size=weight_size, uma_chunk_size=chunk, a=a, c=c,
        val_offset=(None if val_offset is None else int(val_offset)),
        tile_bags=int(tile_bags))

    if offsets is None and len(i_shape) > 1:
        out = out.reshape(*i_shape, embedding_dim)
    return out


# ----------------------------------------------------------------------------
# Pure numpy reference (same hash) for verification.
# ----------------------------------------------------------------------------
def _reference_forward(hashed_weight, random_numbers, indices, offsets,
                       embedding_dim, val_offset=None, uma_chunk_size=1):
    rn = np.asarray(random_numbers).astype(np.int64)
    a = int(rn[1]) & 0xFFFFFFFF
    b = int(rn[2])
    c = int(rn[3]) & 0xFFFFFFFF
    w = np.asarray(jax.device_get(hashed_weight)).astype(np.float32)
    W = int(w.shape[0])
    chunk = int(uma_chunk_size)
    wprime = W - chunk + 1

    idx_np = np.asarray(jax.device_get(indices))
    i_shape = tuple(idx_np.shape)
    flat = idx_np.astype(np.int64).reshape(-1)
    if val_offset is not None:
        flat = flat + int(val_offset)
    flat = flat & 0xFFFFFFFF
    f_i = ((a * flat + c) & 0xFFFFFFFF) % wprime                  # (n,)

    g_d, d_mod = _per_lane_hash_offsets(int(embedding_dim), b, chunk, wprime)
    h = (f_i[:, None] + g_d[None, :].astype(np.int64)) % wprime
    h = h + d_mod[None, :].astype(np.int64)                       # (n, D)
    vals = w[h]                                                   # (n, D)

    if offsets is None:
        out = vals
        if len(i_shape) > 1:
            out = out.reshape(*i_shape, embedding_dim)
        return out
    off = np.asarray(jax.device_get(offsets)).astype(np.int64)
    n = flat.shape[0]
    sizes = np.diff(np.concatenate([off, np.array([n], dtype=np.int64)]))
    bag = int(sizes[0])
    return vals.reshape(len(off), bag, embedding_dim).sum(axis=1)


if __name__ == "__main__":
    # Module hyper-parameters (mirrors HashedEmbeddingBag.__init__)
    num_embeddings = 1024
    embedding_dim = 32
    compression = 1.0 / 64.0
    seed = 1024
    weight_size = int(num_embeddings * embedding_dim * compression + 1)  # 513

    r = np.random.RandomState(seed)
    random_numbers = np.concatenate(
        [np.array([2038074743]), r.randint(0, 2038074743, (50,))]
    ).astype(np.int64)

    low = -math.sqrt(1.0 / num_embeddings)
    high = math.sqrt(1.0 / num_embeddings)
    key = jax.random.PRNGKey(0)
    kw, ki1, ki2 = jax.random.split(key, 3)
    hashed_weight = jax.random.uniform(kw, (weight_size,), minval=low,
                                       maxval=high, dtype=jnp.float32)

    # Case 1: 2D indices, no offsets -> per-position lookup, output (B, L, D).
    B, L = 8, 8
    indices_2d = jax.random.randint(ki1, (B, L), 0, num_embeddings,
                                    dtype=jnp.int32)
    out1 = jax.block_until_ready(
        hashed_embedding_bag_forward(hashed_weight, random_numbers, indices_2d,
                                     embedding_dim=embedding_dim))

    # Case 2: 1D indices + offsets -> bag sums (mode='sum'), output (bags, D).
    n_idx, bag = 32, 4
    indices_1d = jax.random.randint(ki2, (n_idx,), 0, num_embeddings,
                                    dtype=jnp.int32)
    offsets = jnp.arange(0, n_idx, bag, dtype=jnp.int32)
    out2 = jax.block_until_ready(
        hashed_embedding_bag_forward(hashed_weight, random_numbers, indices_1d,
                                     offsets=offsets,
                                     embedding_dim=embedding_dim))

    # Verify against the numpy reference (same hash).
    ref1 = _reference_forward(hashed_weight, random_numbers, indices_2d, None,
                              embedding_dim)
    ref2 = _reference_forward(hashed_weight, random_numbers, indices_1d,
                              offsets, embedding_dim)
    assert out1.shape == (B, L, embedding_dim)
    assert out2.shape == (n_idx // bag, embedding_dim)
    # Tolerance accounts for possible multi-pass f32 MXU matmul rounding.
    np.testing.assert_allclose(np.asarray(out1), ref1, rtol=2e-3, atol=2e-3)
    np.testing.assert_allclose(np.asarray(out2), ref2, rtol=2e-3, atol=2e-3)

    print("KERNEL_OK")
</pallas_src>

<mosaic_0001>
module attributes {stable_mosaic.version = 11 : i64} {
  func.func @_hashed_bag_kernel(%arg0: i32, %arg1: memref<64x1xi32, #tpu.memory_space<vmem>>, %arg2: memref<640x32xf32, #tpu.memory_space<vmem>>, %arg3: memref<64x32xf32, #tpu.memory_space<vmem>>) attributes {dimension_semantics = [#tpu.dimension_semantics<parallel>], iteration_bounds = array<i64: 1>, scalar_prefetch = 0 : i64, scratch_operands = 0 : i64, tpu.core_type = #tpu.core_type<tc>, window_params = [{transform_indices = @transform_0, window_bounds = array<i64: 64, 1>}, {pipeline_mode = #tpu.pipeline_mode<synchronous>, transform_indices = @transform_1, window_bounds = array<i64: 640, 32>}, {transform_indices = @transform_2, window_bounds = array<i64: 64, 32>}]} {
    %c0 = arith.constant 0 : index
    %c0_0 = arith.constant 0 : index
    %0 = vector.load %arg1[%c0, %c0_0] : memref<64x1xi32, #tpu.memory_space<vmem>>, vector<64x1xi32>
    %1 = tpu.iota {dimensions = array<i32: 1>} : vector<64x640xi32>
    %cst = arith.constant 0.000000e+00 : f32
    %2 = vector.broadcast %cst : f32 to vector<64x32xf32>
    %c0_i32 = arith.constant 0 : i32
    %3 = vector.broadcast %c0_i32 : i32 to vector<64x640xi32>
    %4 = arith.addi %1, %3 : vector<64x640xi32>
    %cst_1 = arith.constant 0.000000e+00 : f32
    %5 = vector.broadcast %cst_1 : f32 to vector<64x640xf32>
    %6 = vector.broadcast %0 : vector<64x1xi32> to vector<64x640xi32>
    %7 = arith.cmpi eq, %6, %4 : vector<64x640xi32>
    %8 = arith.extui %7 : vector<64x640xi1> to vector<64x640xi32>
    %9 = arith.sitofp %8 : vector<64x640xi32> to vector<64x640xf32>
    %10 = arith.addf %5, %9 : vector<64x640xf32>
    %c0_2 = arith.constant 0 : index
    %c0_3 = arith.constant 0 : index
    %11 = vector.load %arg2[%c0_2, %c0_3] : memref<640x32xf32, #tpu.memory_space<vmem>>, vector<640x32xf32>
    %cst_4 = arith.constant dense<0.000000e+00> : vector<64x32xf32>
    %12 = tpu.matmul %10, %11, %cst_4 {dimension_numbers = #tpu.dot_dimension_numbers<[1], [0], [0], [1], [0, 0, 1, 1], [], []>} : vector<64x640xf32>, vector<640x32xf32>, vector<64x32xf32> -> vector<64x32xf32>
    %13 = arith.addf %2, %12 : vector<64x32xf32>
    %c0_5 = arith.constant 0 : index
    %c0_6 = arith.constant 0 : index
    %14 = vector.load %arg3[%c0_5, %c0_6] : memref<64x32xf32, #tpu.memory_space<vmem>>, vector<64x32xf32>
    tpu.vector_store %arg3[%c0_5, %c0_6], %13 {strides = array<i32>} : memref<64x32xf32, #tpu.memory_space<vmem>>, vector<64x32xf32>,
    return
  }
  func.func @transform_0(%arg0: i32) -> (i32, i32) {
    %c0_i32 = arith.constant 0 : i32
    %c0_i32_0 = arith.constant 0 : i32
    return %arg0, %c0_i32 : i32, i32
  }
  func.func @transform_1(%arg0: i32) -> (i32, i32) {
    %c0_i32 = arith.constant 0 : i32
    %c0_i32_0 = arith.constant 0 : i32
    %c0_i32_1 = arith.constant 0 : i32
    return %c0_i32, %c0_i32_0 : i32, i32
  }
  func.func @transform_2(%arg0: i32) -> (i32, i32) {
    %c0_i32 = arith.constant 0 : i32
    %c0_i32_0 = arith.constant 0 : i32
    return %arg0, %c0_i32 : i32, i32
  }
}

</mosaic_0001>

<llo_original>
// kernel: _forward_impl.1
$region0: #{_forward_impl.1}
  #allocation0 [shape = 'u32[]', space=smem, size = 0x4, offset = 0x4, fixed_abs, tag = 'smem constant byte address 0x4 - core index']
  #allocation1 [shape = 'u32[144,128]{1,0:T(1,128)}', space=vmem, size = 0x12000, scoped, tag = 'internal scratch']
  %s0 = inlined_call_operand.vmem [shape: s32[64,1], index: 0, kind: input, shape index: {}]
  %s1 = inlined_call_operand.vmem [shape: f32[640,32], index: 1, kind: input, shape index: {}]
  %s2 = inlined_call_operand.vmem [shape: f32[64,32], index: 2, kind: output, shape index: {}]
  %s3 = sld [smem:[#allocation0]]
  $region18: #{_forward_impl.1} parent=0
    _
  %s5 = ssub.s32 1, %s3
  %s6 = scalar_select 0, %s5, %s3
  // Predicated region
  $region2: #{_forward_impl.1} parent=0 // pred_check
    _
  $region3: #{_forward_impl.1} parent=0 // pred_check_branch
    %8 = sbr.rel (0) target = $region5
  $region4: #{_forward_impl.1} parent=0 // pred_region
    _
  $region5: #{_forward_impl.1} parent=0 // pred_fallthru
    _
  // Predicated region
  $region6: #{_forward_impl.1} parent=0 // pred_check
    _
  $region7: #{_forward_impl.1} parent=0 // pred_check_branch
    %10 = sbr.rel (0) target = $region9
  $region8: #{_forward_impl.1} parent=0 // pred_region
    _
  $region9: #{_forward_impl.1} parent=0 // pred_fallthru
    _
  %v11 = vld [vmem:[%s0] sm:$0xff]
  %v12 = vld [vmem:[%s0 + $0x8] sm:$0xff]
  %v13 = vld [vmem:[%s0 + $0x10] sm:$0xff]
  %v14 = vld [vmem:[%s0 + $0x18] sm:$0xff]
  %v15 = vld [vmem:[%s0 + $0x20] sm:$0xff]
  %v16 = vld [vmem:[%s0 + $0x28] sm:$0xff]
  %v17 = vld [vmem:[%s0 + $0x30] sm:$0xff]
  %v18 = vld [vmem:[%s0 + $0x38] sm:$0xff]
  %v19 = vlaneseq
  %v20 = vand.u32 %v19, 127
  %v21 = vadd.s32 %v20, 128
  %v22 = vadd.s32 %v20, 256
  %v23 = vadd.s32 %v20, 384
  %v24 = vadd.s32 %v20, 512
  %25 = vset.pattern.permute.xlu0 0
  %26 = vperm.xlu0 %25, %v11
  %v27 = vpop.permute.xlu0 %26
  %28 = vset.pattern.permute.xlu0 0
  %29 = vperm.xlu0 %28, %v12
  %v30 = vpop.permute.xlu0 %29
  %31 = vset.pattern.permute.xlu0 0
  %32 = vperm.xlu0 %31, %v13
  %v33 = vpop.permute.xlu0 %32
  %34 = vset.pattern.permute.xlu0 0
  %35 = vperm.xlu0 %34, %v14
  %v36 = vpop.permute.xlu0 %35
  %37 = vset.pattern.permute.xlu0 0
  %38 = vperm.xlu0 %37, %v15
  %v39 = vpop.permute.xlu0 %38
  %40 = vset.pattern.permute.xlu0 0
  %41 = vperm.xlu0 %40, %v16
  %v42 = vpop.permute.xlu0 %41
  %43 = vset.pattern.permute.xlu0 0
  %44 = vperm.xlu0 %43, %v17
  %v45 = vpop.permute.xlu0 %44
  %46 = vset.pattern.permute.xlu0 0
  %47 = vperm.xlu0 %46, %v18
  %v48 = vpop.permute.xlu0 %47
  %vm49 = vcmp.eq.s32.totalorder %v27, %v20
  %vm50 = vcmp.eq.s32.totalorder %v27, %v21
  %vm51 = vcmp.eq.s32.totalorder %v27, %v22
  %vm52 = vcmp.eq.s32.totalorder %v27, %v23
  %vm53 = vcmp.eq.s32.totalorder %v27, %v24
  %vm54 = vcmp.eq.s32.totalorder %v30, %v20
  %vm55 = vcmp.eq.s32.totalorder %v30, %v21
  %vm56 = vcmp.eq.s32.totalorder %v30, %v22
  %vm57 = vcmp.eq.s32.totalorder %v30, %v23
  %vm58 = vcmp.eq.s32.totalorder %v30, %v24
  %vm59 = vcmp.eq.s32.totalorder %v33, %v20
  %vm60 = vcmp.eq.s32.totalorder %v33, %v21
  %vm61 = vcmp.eq.s32.totalorder %v33, %v22
  %vm62 = vcmp.eq.s32.totalorder %v33, %v23
  %vm63 = vcmp.eq.s32.totalorder %v33, %v24
  %vm64 = vcmp.eq.s32.totalorder %v36, %v20
  %vm65 = vcmp.eq.s32.totalorder %v36, %v21
  %vm66 = vcmp.eq.s32.totalorder %v36, %v22
  %vm67 = vcmp.eq.s32.totalorder %v36, %v23
  %vm68 = vcmp.eq.s32.totalorder %v36, %v24
  %vm69 = vcmp.eq.s32.totalorder %v39, %v20
  %vm70 = vcmp.eq.s32.totalorder %v39, %v21
  %vm71 = vcmp.eq.s32.totalorder %v39, %v22
  %vm72 = vcmp.eq.s32.totalorder %v39, %v23
  %vm73 = vcmp.eq.s32.totalorder %v39, %v24
  %vm74 = vcmp.eq.s32.totalorder %v42, %v20
  %vm75 = vcmp.eq.s32.totalorder %v42, %v21
  %vm76 = vcmp.eq.s32.totalorder %v42, %v22
  %vm77 = vcmp.eq.s32.totalorder %v42, %v23
  %vm78 = vcmp.eq.s32.totalorder %v42, %v24
  %vm79 = vcmp.eq.s32.totalorder %v45, %v20
  %vm80 = vcmp.eq.s32.totalorder %v45, %v21
  %vm81 = vcmp.eq.s32.totalorder %v45, %v22
  %vm82 = vcmp.eq.s32.totalorder %v45, %v23
  %vm83 = vcmp.eq.s32.totalorder %v45, %v24
  %vm84 = vcmp.eq.s32.totalorder %v48, %v20
  %vm85 = vcmp.eq.s32.totalorder %v48, %v21
  %vm86 = vcmp.eq.s32.totalorder %v48, %v22
  %vm87 = vcmp.eq.s32.totalorder %v48, %v23
  %vm88 = vcmp.eq.s32.totalorder %v48, %v24
  %v89 = vsel %vm49, 1, 0
  %v90 = vsel %vm50, 1, 0
  %v91 = vsel %vm51, 1, 0
  %v92 = vsel %vm52, 1, 0
  %v93 = vsel %vm53, 1, 0
  %v94 = vsel %vm54, 1, 0
  %v95 = vsel %vm55, 1, 0
  %v96 = vsel %vm56, 1, 0
  %v97 = vsel %vm57, 1, 0
  %v98 = vsel %vm58, 1, 0
  %v99 = vsel %vm59, 1, 0
  %v100 = vsel %vm60, 1, 0
  %v101 = vsel %vm61, 1, 0
  %v102 = vsel %vm62, 1, 0
  %v103 = vsel %vm63, 1, 0
  %v104 = vsel %vm64, 1, 0
  %v105 = vsel %vm65, 1, 0
  %v106 = vsel %vm66, 1, 0
  %v107 = vsel %vm67, 1, 0
  %v108 = vsel %vm68, 1, 0
  %v109 = vsel %vm69, 1, 0
  %v110 = vsel %vm70, 1, 0
  %v111 = vsel %vm71, 1, 0
  %v112 = vsel %vm72, 1, 0
  %v113 = vsel %vm73, 1, 0
  %v114 = vsel %vm74, 1, 0
  %v115 = vsel %vm75, 1, 0
  %v116 = vsel %vm76, 1, 0
  %v117 = vsel %vm77, 1, 0
  %v118 = vsel %vm78, 1, 0
  %v119 = vsel %vm79, 1, 0
  %v120 = vsel %vm80, 1, 0
  %v121 = vsel %vm81, 1, 0
  %v122 = vsel %vm82, 1, 0
  %v123 = vsel %vm83, 1, 0
  %v124 = vsel %vm84, 1, 0
  %v125 = vsel %vm85, 1, 0
  %v126 = vsel %vm86, 1, 0
  %v127 = vsel %vm87, 1, 0
  %v128 = vsel %vm88, 1, 0
  %v129 = vcvt.s32.f32 %v89
  %v130 = vcvt.s32.f32 %v90
  %v131 = vcvt.s32.f32 %v91
  %v132 = vcvt.s32.f32 %v92
  %v133 = vcvt.s32.f32 %v93
  %v134 = vcvt.s32.f32 %v94
  %v135 = vcvt.s32.f32 %v95
  %v136 = vcvt.s32.f32 %v96
  %v137 = vcvt.s32.f32 %v97
  %v138 = vcvt.s32.f32 %v98
  %v139 = vcvt.s32.f32 %v99
  %v140 = vcvt.s32.f32 %v100
  %v141 = vcvt.s32.f32 %v101
  %v142 = vcvt.s32.f32 %v102
  %v143 = vcvt.s32.f32 %v103
  %v144 = vcvt.s32.f32 %v104
  %v145 = vcvt.s32.f32 %v105
  %v146 = vcvt.s32.f32 %v106
  %v147 = vcvt.s32.f32 %v107
  %v148 = vcvt.s32.f32 %v108
  %v149 = vcvt.s32.f32 %v109
  %v150 = vcvt.s32.f32 %v110
  %v151 = vcvt.s32.f32 %v111
  %v152 = vcvt.s32.f32 %v112
  %v153 = vcvt.s32.f32 %v113
  %v154 = vcvt.s32.f32 %v114
  %v155 = vcvt.s32.f32 %v115
  %v156 = vcvt.s32.f32 %v116
  %v157 = vcvt.s32.f32 %v117
  %v158 = vcvt.s32.f32 %v118
  %v159 = vcvt.s32.f32 %v119
  %v160 = vcvt.s32.f32 %v120
  %v161 = vcvt.s32.f32 %v121
  %v162 = vcvt.s32.f32 %v122
  %v163 = vcvt.s32.f32 %v123
  %v164 = vcvt.s32.f32 %v124
  %v165 = vcvt.s32.f32 %v125
  %v166 = vcvt.s32.f32 %v126
  %v167 = vcvt.s32.f32 %v127
  %v168 = vcvt.s32.f32 %v128
  %v169 = vadd.f32 %v129, 0.0
  %v170 = vadd.f32 %v130, 0.0
  %v171 = vadd.f32 %v131, 0.0
  %v172 = vadd.f32 %v132, 0.0
  %v173 = vadd.f32 %v133, 0.0
  %v174 = vadd.f32 %v134, 0.0
  %v175 = vadd.f32 %v135, 0.0
  %v176 = vadd.f32 %v136, 0.0
  %v177 = vadd.f32 %v137, 0.0
  %v178 = vadd.f32 %v138, 0.0
  %v179 = vadd.f32 %v139, 0.0
  %v180 = vadd.f32 %v140, 0.0
  %v181 = vadd.f32 %v141, 0.0
  %v182 = vadd.f32 %v142, 0.0
  %v183 = vadd.f32 %v143, 0.0
  %v184 = vadd.f32 %v144, 0.0
  %v185 = vadd.f32 %v145, 0.0
  %v186 = vadd.f32 %v146, 0.0
  %v187 = vadd.f32 %v147, 0.0
  %v188 = vadd.f32 %v148, 0.0
  %v189 = vadd.f32 %v149, 0.0
  %v190 = vadd.f32 %v150, 0.0
  %v191 = vadd.f32 %v151, 0.0
  %v192 = vadd.f32 %v152, 0.0
  %v193 = vadd.f32 %v153, 0.0
  %v194 = vadd.f32 %v154, 0.0
  %v195 = vadd.f32 %v155, 0.0
  %v196 = vadd.f32 %v156, 0.0
  %v197 = vadd.f32 %v157, 0.0
  %v198 = vadd.f32 %v158, 0.0
  %v199 = vadd.f32 %v159, 0.0
  %v200 = vadd.f32 %v160, 0.0
  %v201 = vadd.f32 %v161, 0.0
  %v202 = vadd.f32 %v162, 0.0
  %v203 = vadd.f32 %v163, 0.0
  %v204 = vadd.f32 %v164, 0.0
  %v205 = vadd.f32 %v165, 0.0
  %v206 = vadd.f32 %v166, 0.0
  %v207 = vadd.f32 %v167, 0.0
  %v208 = vadd.f32 %v168, 0.0
  %v209 = vld [vmem:[%s1] sm:$0xff]
  %v210 = vld [vmem:[%s1 + $0x8] sm:$0xff]
  %v211 = vld [vmem:[%s1 + $0x10] sm:$0xff]
  %v212 = vld [vmem:[%s1 + $0x18] sm:$0xff]
  %v213 = vld [vmem:[%s1 + $0x20] sm:$0xff]
  %v214 = vld [vmem:[%s1 + $0x28] sm:$0xff]
  %v215 = vld [vmem:[%s1 + $0x30] sm:$0xff]
  %v216 = vld [vmem:[%s1 + $0x38] sm:$0xff]
  %v217 = vld [vmem:[%s1 + $0x40] sm:$0xff]
  %v218 = vld [vmem:[%s1 + $0x48] sm:$0xff]
  %v219 = vld [vmem:[%s1 + $0x50] sm:$0xff]
  %v220 = vld [vmem:[%s1 + $0x58] sm:$0xff]
  %v221 = vld [vmem:[%s1 + $0x60] sm:$0xff]
  %v222 = vld [vmem:[%s1 + $0x68] sm:$0xff]
  %v223 = vld [vmem:[%s1 + $0x70] sm:$0xff]
  %v224 = vld [vmem:[%s1 + $0x78] sm:$0xff]
  %v225 = vld [vmem:[%s1 + $0x80] sm:$0xff]
  %v226 = vld [vmem:[%s1 + $0x88] sm:$0xff]
  %v227 = vld [vmem:[%s1 + $0x90] sm:$0xff]
  %v228 = vld [vmem:[%s1 + $0x98] sm:$0xff]
  %v229 = vld [vmem:[%s1 + $0xa0] sm:$0xff]
  %v230 = vld [vmem:[%s1 + $0xa8] sm:$0xff]
  %v231 = vld [vmem:[%s1 + $0xb0] sm:$0xff]
  %v232 = vld [vmem:[%s1 + $0xb8] sm:$0xff]
  %v233 = vld [vmem:[%s1 + $0xc0] sm:$0xff]
  %v234 = vld [vmem:[%s1 + $0xc8] sm:$0xff]
  %v235 = vld [vmem:[%s1 + $0xd0] sm:$0xff]
  %v236 = vld [vmem:[%s1 + $0xd8] sm:$0xff]
  %v237 = vld [vmem:[%s1 + $0xe0] sm:$0xff]
  %v238 = vld [vmem:[%s1 + $0xe8] sm:$0xff]
  %v239 = vld [vmem:[%s1 + $0xf0] sm:$0xff]
  %v240 = vld [vmem:[%s1 + $0xf8] sm:$0xff]
  %v241 = vld [vmem:[%s1 + $0x100] sm:$0xff]
  %v242 = vld [vmem:[%s1 + $0x108] sm:$0xff]
  %v243 = vld [vmem:[%s1 + $0x110] sm:$0xff]
  %v244 = vld [vmem:[%s1 + $0x118] sm:$0xff]
  %v245 = vld [vmem:[%s1 + $0x120] sm:$0xff]
  %v246 = vld [vmem:[%s1 + $0x128] sm:$0xff]
  %v247 = vld [vmem:[%s1 + $0x130] sm:$0xff]
  %v248 = vld [vmem:[%s1 + $0x138] sm:$0xff]
  %v249 = vld [vmem:[%s1 + $0x140] sm:$0xff]
  %v250 = vld [vmem:[%s1 + $0x148] sm:$0xff]
  %v251 = vld [vmem:[%s1 + $0x150] sm:$0xff]
  %v252 = vld [vmem:[%s1 + $0x158] sm:$0xff]
  %v253 = vld [vmem:[%s1 + $0x160] sm:$0xff]
  %v254 = vld [vmem:[%s1 + $0x168] sm:$0xff]
  %v255 = vld [vmem:[%s1 + $0x170] sm:$0xff]
  %v256 = vld [vmem:[%s1 + $0x178] sm:$0xff]
  %v257 = vld [vmem:[%s1 + $0x180] sm:$0xff]
  %v258 = vld [vmem:[%s1 + $0x188] sm:$0xff]
  %v259 = vld [vmem:[%s1 + $0x190] sm:$0xff]
  %v260 = vld [vmem:[%s1 + $0x198] sm:$0xff]
  %v261 = vld [vmem:[%s1 + $0x1a0] sm:$0xff]
  %v262 = vld [vmem:[%s1 + $0x1a8] sm:$0xff]
  %v263 = vld [vmem:[%s1 + $0x1b0] sm:$0xff]
  %v264 = vld [vmem:[%s1 + $0x1b8] sm:$0xff]
  %v265 = vld [vmem:[%s1 + $0x1c0] sm:$0xff]
  %v266 = vld [vmem:[%s1 + $0x1c8] sm:$0xff]
  %v267 = vld [vmem:[%s1 + $0x1d0] sm:$0xff]
  %v268 = vld [vmem:[%s1 + $0x1d8] sm:$0xff]
  %v269 = vld [vmem:[%s1 + $0x1e0] sm:$0xff]
  %v270 = vld [vmem:[%s1 + $0x1e8] sm:$0xff]
  %v271 = vld [vmem:[%s1 + $0x1f0] sm:$0xff]
  %v272 = vld [vmem:[%s1 + $0x1f8] sm:$0xff]
  %v273 = vld [vmem:[%s1 + $0x200] sm:$0xff]
  %v274 = vld [vmem:[%s1 + $0x208] sm:$0xff]
  %v275 = vld [vmem:[%s1 + $0x210] sm:$0xff]
  %v276 = vld [vmem:[%s1 + $0x218] sm:$0xff]
  %v277 = vld [vmem:[%s1 + $0x220] sm:$0xff]
  %v278 = vld [vmem:[%s1 + $0x228] sm:$0xff]
  %v279 = vld [vmem:[%s1 + $0x230] sm:$0xff]
  %v280 = vld [vmem:[%s1 + $0x238] sm:$0xff]
  %v281 = vld [vmem:[%s1 + $0x240] sm:$0xff]
  %v282 = vld [vmem:[%s1 + $0x248] sm:$0xff]
  %v283 = vld [vmem:[%s1 + $0x250] sm:$0xff]
  %v284 = vld [vmem:[%s1 + $0x258] sm:$0xff]
  %v285 = vld [vmem:[%s1 + $0x260] sm:$0xff]
  %v286 = vld [vmem:[%s1 + $0x268] sm:$0xff]
  %v287 = vld [vmem:[%s1 + $0x270] sm:$0xff]
  %v288 = vld [vmem:[%s1 + $0x278] sm:$0xff]
  %289 = vmatprep.subr.mxu0 0.0
  %290 = vmatpush1.msra.mxu0 %v224
  %291 = vmatprep.subr.mxu0 0.0
  %292 = vmatpush1.msra.mxu0 %v223
  %293 = vmatprep.subr.mxu0 0.0
  %294 = vmatpush1.msra.mxu0 %v222
  %295 = vmatprep.subr.mxu0 0.0
  %296 = vmatpush1.msra.mxu0 %v221
  %297 = vmatprep.subr.mxu0 0.0
  %298 = vmatpush1.msra.mxu0 %v220
  %299 = vmatprep.subr.mxu0 0.0
  %300 = vmatpush1.msra.mxu0 %v219
  %301 = vmatprep.subr.mxu0 0.0
  %302 = vmatpush1.msra.mxu0 %v218
  %303 = vmatprep.subr.mxu0 0.0
  %304 = vmatpush1.msra.mxu0 %v217
  %305 = vmatprep.subr.mxu0 0.0
  %306 = vmatpush1.msra.mxu0 %v216
  %307 = vmatprep.subr.mxu0 0.0
  %308 = vmatpush1.msra.mxu0 %v215
  %309 = vmatprep.subr.mxu0 0.0
  %310 = vmatpush1.msra.mxu0 %v214
  %311 = vmatprep.subr.mxu0 0.0
  %312 = vmatpush1.msra.mxu0 %v213
  %313 = vmatprep.subr.mxu0 0.0
  %314 = vmatpush1.msra.mxu0 %v212
  %315 = vmatprep.subr.mxu0 0.0
  %316 = vmatpush1.msra.mxu0 %v211
  %317 = vmatprep.subr.mxu0 0.0
  %318 = vmatpush1.msra.mxu0 %v210
  %319 = vmatprep.subr.mxu0 0.0
  %320 = vmatpush1.msra.mxu0 %v209
  %321 = vmatprep.subr.mxu0 0.0
  %322 = vmatpush2.msra.mxu0 %v240
  %323 = vmatprep.subr.mxu0 0.0
  %324 = vmatpush2.msra.mxu0 %v239
  %325 = vmatprep.subr.mxu0 0.0
  %326 = vmatpush2.msra.mxu0 %v238
  %327 = vmatprep.subr.mxu0 0.0
  %328 = vmatpush2.msra.mxu0 %v237
  %329 = vmatprep.subr.mxu0 0.0
  %330 = vmatpush2.msra.mxu0 %v236
  %331 = vmatprep.subr.mxu0 0.0
  %332 = vmatpush2.msra.mxu0 %v235
  %333 = vmatprep.subr.mxu0 0.0
  %334 = vmatpush2.msra.mxu0 %v234
  %335 = vmatprep.subr.mxu0 0.0
  %336 = vmatpush2.msra.mxu0 %v233
  %337 = vmatprep.subr.mxu0 0.0
  %338 = vmatpush2.msra.mxu0 %v232
  %339 = vmatprep.subr.mxu0 0.0
  %340 = vmatpush2.msra.mxu0 %v231
  %341 = vmatprep.subr.mxu0 0.0
  %342 = vmatpush2.msra.mxu0 %v230
  %343 = vmatprep.subr.mxu0 0.0
  %344 = vmatpush2.msra.mxu0 %v229
  %345 = vmatprep.subr.mxu0 0.0
  %346 = vmatpush2.msra.mxu0 %v228
  %347 = vmatprep.subr.mxu0 0.0
  %348 = vmatpush2.msra.mxu0 %v227
  %349 = vmatprep.subr.mxu0 0.0
  %350 = vmatpush2.msra.mxu0 %v226
  %351 = vmatprep.subr.mxu0 0.0
  %352 = vmatpush2.msra.mxu0 %v225
  %353 = vmatprep.mubr.f32.mxu0 %v170
  %354 = vmatmul.mubr.f32.gmra.mxu0 %v169
  %v355 = vpop.f32.mrf.mxu0
  %v356 = vadd.f32 0.0, %v355
  %v357 = vpop.f32.mrf.mxu0
  %358 = vmatprep.mubr.f32.mxu0 %v175
  %359 = vmatmul.mubr.f32.gmra.mxu0 %v174
  %v360 = vpop.f32.mrf.mxu0
  %v361 = vadd.f32 0.0, %v360
  %v362 = vpop.f32.mrf.mxu0
  %363 = vmatprep.mubr.f32.mxu0 %v180
  %364 = vmatmul.mubr.f32.gmra.mxu0 %v179
  %v365 = vpop.f32.mrf.mxu0
  %v366 = vadd.f32 0.0, %v365
  %v367 = vpop.f32.mrf.mxu0
  %368 = vmatprep.mubr.f32.mxu0 %v185
  %369 = vmatmul.mubr.f32.gmra.mxu0 %v184
  %v370 = vpop.f32.mrf.mxu0
  %v371 = vadd.f32 0.0, %v370
  %v372 = vpop.f32.mrf.mxu0
  %373 = vmatprep.mubr.f32.mxu0 %v190
  %374 = vmatmul.mubr.f32.gmra.mxu0 %v189
  %v375 = vpop.f32.mrf.mxu0
  %v376 = vadd.f32 0.0, %v375
  %v377 = vpop.f32.mrf.mxu0
  %378 = vmatprep.mubr.f32.mxu0 %v195
  %379 = vmatmul.mubr.f32.gmra.mxu0 %v194
  %v380 = vpop.f32.mrf.mxu0
  %v381 = vadd.f32 0.0, %v380
  %v382 = vpop.f32.mrf.mxu0
  %383 = vmatprep.mubr.f32.mxu0 %v200
  %384 = vmatmul.mubr.f32.gmra.mxu0 %v199
  %v385 = vpop.f32.mrf.mxu0
  %v386 = vadd.f32 0.0, %v385
  %v387 = vpop.f32.mrf.mxu0
  %388 = vmatprep.mubr.f32.mxu0 %v205
  %389 = vmatmul.mubr.f32.gmra.mxu0 %v204
  %v390 = vpop.f32.mrf.mxu0
  %v391 = vadd.f32 0.0, %v390
  %v392 = vpop.f32.mrf.mxu0
  %393 = vdwg.mxu0
  %394 = vmatprep.subr.mxu0 0.0
  %395 = vmatpush1.msra.mxu0 %v256
  %396 = vmatprep.subr.mxu0 0.0
  %397 = vmatpush1.msra.mxu0 %v255
  %398 = vmatprep.subr.mxu0 0.0
  %399 = vmatpush1.msra.mxu0 %v254
  %400 = vmatprep.subr.mxu0 0.0
  %401 = vmatpush1.msra.mxu0 %v253
  %402 = vmatprep.subr.mxu0 0.0
  %403 = vmatpush1.msra.mxu0 %v252
  %404 = vmatprep.subr.mxu0 0.0
  %405 = vmatpush1.msra.mxu0 %v251
  %406 = vmatprep.subr.mxu0 0.0
  %407 = vmatpush1.msra.mxu0 %v250
  %408 = vmatprep.subr.mxu0 0.0
  %409 = vmatpush1.msra.mxu0 %v249
  %410 = vmatprep.subr.mxu0 0.0
  %411 = vmatpush1.msra.mxu0 %v248
  %412 = vmatprep.subr.mxu0 0.0
  %413 = vmatpush1.msra.mxu0 %v247
  %414 = vmatprep.subr.mxu0 0.0
  %415 = vmatpush1.msra.mxu0 %v246
  %416 = vmatprep.subr.mxu0 0.0
  %417 = vmatpush1.msra.mxu0 %v245
  %418 = vmatprep.subr.mxu0 0.0
  %419 = vmatpush1.msra.mxu0 %v244
  %420 = vmatprep.subr.mxu0 0.0
  %421 = vmatpush1.msra.mxu0 %v243
  %422 = vmatprep.subr.mxu0 0.0
  %423 = vmatpush1.msra.mxu0 %v242
  %424 = vmatprep.subr.mxu0 0.0
  %425 = vmatpush1.msra.mxu0 %v241
  %426 = vmatprep.subr.mxu0 0.0
  %427 = vmatpush2.msra.mxu0 %v272
  %428 = vmatprep.subr.mxu0 0.0
  %429 = vmatpush2.msra.mxu0 %v271
  %430 = vmatprep.subr.mxu0 0.0
  %431 = vmatpush2.msra.mxu0 %v270
  %432 = vmatprep.subr.mxu0 0.0
  %433 = vmatpush2.msra.mxu0 %v269
  %434 = vmatprep.subr.mxu0 0.0
  %435 = vmatpush2.msra.mxu0 %v268
  %436 = vmatprep.subr.mxu0 0.0
  %437 = vmatpush2.msra.mxu0 %v267
  %438 = vmatprep.subr.mxu0 0.0
  %439 = vmatpush2.msra.mxu0 %v266
  %440 = vmatprep.subr.mxu0 0.0
  %441 = vmatpush2.msra.mxu0 %v265
  %442 = vmatprep.subr.mxu0 0.0
  %443 = vmatpush2.msra.mxu0 %v264
  %444 = vmatprep.subr.mxu0 0.0
  %445 = vmatpush2.msra.mxu0 %v263
  %446 = vmatprep.subr.mxu0 0.0
  %447 = vmatpush2.msra.mxu0 %v262
  %448 = vmatprep.subr.mxu0 0.0
  %449 = vmatpush2.msra.mxu0 %v261
  %450 = vmatprep.subr.mxu0 0.0
  %451 = vmatpush2.msra.mxu0 %v260
  %452 = vmatprep.subr.mxu0 0.0
  %453 = vmatpush2.msra.mxu0 %v259
  %454 = vmatprep.subr.mxu0 0.0
  %455 = vmatpush2.msra.mxu0 %v258
  %456 = vmatprep.subr.mxu0 0.0
  %457 = vmatpush2.msra.mxu0 %v257
  %458 = vmatprep.mubr.f32.mxu0 %v172
  %459 = vmatmul.mubr.f32.gmra.mxu0 %v171
  %v460 = vpop.f32.mrf.mxu0
  %v461 = vadd.f32 %v356, %v460
  %v462 = vpop.f32.mrf.mxu0
  %463 = vmatprep.mubr.f32.mxu0 %v177
  %464 = vmatmul.mubr.f32.gmra.mxu0 %v176
  %v465 = vpop.f32.mrf.mxu0
  %v466 = vadd.f32 %v361, %v465
  %v467 = vpop.f32.mrf.mxu0
  %468 = vmatprep.mubr.f32.mxu0 %v182
  %469 = vmatmul.mubr.f32.gmra.mxu0 %v181
  %v470 = vpop.f32.mrf.mxu0
  %v471 = vadd.f32 %v366, %v470
  %v472 = vpop.f32.mrf.mxu0
  %473 = vmatprep.mubr.f32.mxu0 %v187
  %474 = vmatmul.mubr.f32.gmra.mxu0 %v186
  %v475 = vpop.f32.mrf.mxu0
  %v476 = vadd.f32 %v371, %v475
  %v477 = vpop.f32.mrf.mxu0
  %478 = vmatprep.mubr.f32.mxu0 %v192
  %479 = vmatmul.mubr.f32.gmra.mxu0 %v191
  %v480 = vpop.f32.mrf.mxu0
  %v481 = vadd.f32 %v376, %v480
  %v482 = vpop.f32.mrf.mxu0
  %483 = vmatprep.mubr.f32.mxu0 %v197
  %484 = vmatmul.mubr.f32.gmra.mxu0 %v196
  %v485 = vpop.f32.mrf.mxu0
  %v486 = vadd.f32 %v381, %v485
  %v487 = vpop.f32.mrf.mxu0
  %488 = vmatprep.mubr.f32.mxu0 %v202
  %489 = vmatmul.mubr.f32.gmra.mxu0 %v201
  %v490 = vpop.f32.mrf.mxu0
  %v491 = vadd.f32 %v386, %v490
  %v492 = vpop.f32.mrf.mxu0
  %493 = vmatprep.mubr.f32.mxu0 %v207
  %494 = vmatmul.mubr.f32.gmra.mxu0 %v206
  %v495 = vpop.f32.mrf.mxu0
  %v496 = vadd.f32 %v391, %v495
  %v497 = vpop.f32.mrf.mxu0
  %498 = vdwg.mxu0
  %499 = vmatprep.subr.mxu0 0.0
  %500 = vmatpush1.msra.mxu0 %v288
  %501 = vmatprep.subr.mxu0 0.0
  %502 = vmatpush1.msra.mxu0 %v287
  %503 = vmatprep.subr.mxu0 0.0
  %504 = vmatpush1.msra.mxu0 %v286
  %505 = vmatprep.subr.mxu0 0.0
  %506 = vmatpush1.msra.mxu0 %v285
  %507 = vmatprep.subr.mxu0 0.0
  %508 = vmatpush1.msra.mxu0 %v284
  %509 = vmatprep.subr.mxu0 0.0
  %510 = vmatpush1.msra.mxu0 %v283
  %511 = vmatprep.subr.mxu0 0.0
  %512 = vmatpush1.msra.mxu0 %v282
  %513 = vmatprep.subr.mxu0 0.0
  %514 = vmatpush1.msra.mxu0 %v281
  %515 = vmatprep.subr.mxu0 0.0
  %516 = vmatpush1.msra.mxu0 %v280
  %517 = vmatprep.subr.mxu0 0.0
  %518 = vmatpush1.msra.mxu0 %v279
  %519 = vmatprep.subr.mxu0 0.0
  %520 = vmatpush1.msra.mxu0 %v278
  %521 = vmatprep.subr.mxu0 0.0
  %522 = vmatpush1.msra.mxu0 %v277
  %523 = vmatprep.subr.mxu0 0.0
  %524 = vmatpush1.msra.mxu0 %v276
  %525 = vmatprep.subr.mxu0 0.0
  %526 = vmatpush1.msra.mxu0 %v275
  %527 = vmatprep.subr.mxu0 0.0
  %528 = vmatpush1.msra.mxu0 %v274
  %529 = vmatprep.subr.mxu0 0.0
  %530 = vmatpush1.msra.mxu0 %v273
  %531 = vmatprep.subr.mxu0 0.0
  %532 = vmatpush2.msra.mxu0 0.0
  %533 = vmatprep.subr.mxu0 0.0
  %534 = vmatpush2.msra.mxu0 0.0
  %535 = vmatprep.subr.mxu0 0.0
  %536 = vmatpush2.msra.mxu0 0.0
  %537 = vmatprep.subr.mxu0 0.0
  %538 = vmatpush2.msra.mxu0 0.0
  %539 = vmatprep.subr.mxu0 0.0
  %540 = vmatpush2.msra.mxu0 0.0
  %541 = vmatprep.subr.mxu0 0.0
  %542 = vmatpush2.msra.mxu0 0.0
  %543 = vmatprep.subr.mxu0 0.0
  %544 = vmatpush2.msra.mxu0 0.0
  %545 = vmatprep.subr.mxu0 0.0
  %546 = vmatpush2.msra.mxu0 0.0
  %547 = vmatprep.subr.mxu0 0.0
  %548 = vmatpush2.msra.mxu0 0.0
  %549 = vmatprep.subr.mxu0 0.0
  %550 = vmatpush2.msra.mxu0 0.0
  %551 = vmatprep.subr.mxu0 0.0
  %552 = vmatpush2.msra.mxu0 0.0
  %553 = vmatprep.subr.mxu0 0.0
  %554 = vmatpush2.msra.mxu0 0.0
  %555 = vmatprep.subr.mxu0 0.0
  %556 = vmatpush2.msra.mxu0 0.0
  %557 = vmatprep.subr.mxu0 0.0
  %558 = vmatpush2.msra.mxu0 0.0
  %559 = vmatprep.subr.mxu0 0.0
  %560 = vmatpush2.msra.mxu0 0.0
  %561 = vmatprep.subr.mxu0 0.0
  %562 = vmatpush2.msra.mxu0 0.0
  %563 = vmatprep.mubr.f32.mxu0 0.0
  %564 = vmatmul.mubr.f32.gmra.mxu0 %v173
  %v565 = vpop.f32.mrf.mxu0
  %v566 = vadd.f32 %v461, %v565
  %v567 = vpop.f32.mrf.mxu0
  %568 = vmatprep.mubr.f32.mxu0 0.0
  %569 = vmatmul.mubr.f32.gmra.mxu0 %v178
  %v570 = vpop.f32.mrf.mxu0
  %v571 = vadd.f32 %v466, %v570
  %v572 = vpop.f32.mrf.mxu0
  %573 = vmatprep.mubr.f32.mxu0 0.0
  %574 = vmatmul.mubr.f32.gmra.mxu0 %v183
  %v575 = vpop.f32.mrf.mxu0
  %v576 = vadd.f32 %v471, %v575
  %v577 = vpop.f32.mrf.mxu0
  %578 = vmatprep.mubr.f32.mxu0 0.0
  %579 = vmatmul.mubr.f32.gmra.mxu0 %v188
  %v580 = vpop.f32.mrf.mxu0
  %v581 = vadd.f32 %v476, %v580
  %v582 = vpop.f32.mrf.mxu0
  %583 = vmatprep.mubr.f32.mxu0 0.0
  %584 = vmatmul.mubr.f32.gmra.mxu0 %v193
  %v585 = vpop.f32.mrf.mxu0
  %v586 = vadd.f32 %v481, %v585
  %v587 = vpop.f32.mrf.mxu0
  %588 = vmatprep.mubr.f32.mxu0 0.0
  %589 = vmatmul.mubr.f32.gmra.mxu0 %v198
  %v590 = vpop.f32.mrf.mxu0
  %v591 = vadd.f32 %v486, %v590
  %v592 = vpop.f32.mrf.mxu0
  %593 = vmatprep.mubr.f32.mxu0 0.0
  %594 = vmatmul.mubr.f32.gmra.mxu0 %v203
  %v595 = vpop.f32.mrf.mxu0
  %v596 = vadd.f32 %v491, %v595
  %v597 = vpop.f32.mrf.mxu0
  %598 = vmatprep.mubr.f32.mxu0 0.0
  %599 = vmatmul.mubr.f32.gmra.mxu0 %v208
  %v600 = vpop.f32.mrf.mxu0
  %v601 = vadd.f32 %v496, %v600
  %v602 = vpop.f32.mrf.mxu0
  %603 = vdwg.mxu0
  %vm604 = vcmask 261120
  %605 = vst.msk [vmem:[%s2] sm:$0xff] %vm604, %v566
  %606 = vst.msk [vmem:[%s2 + $0x8] sm:$0xff] %vm604, %v571
  %607 = vst.msk [vmem:[%s2 + $0x10] sm:$0xff] %vm604, %v576
  %608 = vst.msk [vmem:[%s2 + $0x18] sm:$0xff] %vm604, %v581
  %609 = vst.msk [vmem:[%s2 + $0x20] sm:$0xff] %vm604, %v586
  %610 = vst.msk [vmem:[%s2 + $0x28] sm:$0xff] %vm604, %v591
  %611 = vst.msk [vmem:[%s2 + $0x30] sm:$0xff] %vm604, %v596
  %612 = vst.msk [vmem:[%s2 + $0x38] sm:$0xff] %vm604, %v601
  // Predicated region
  $region10: #{_forward_impl.1} parent=0 // pred_check
    _
  $region11: #{_forward_impl.1} parent=0 // pred_check_branch
    %614 = sbr.rel (0) target = $region13
  $region12: #{_forward_impl.1} parent=0 // pred_region
    _
  $region13: #{_forward_impl.1} parent=0 // pred_fallthru
    _
  // Predicated region
  $region14: #{_forward_impl.1} parent=0 // pred_check
    _
  $region15: #{_forward_impl.1} parent=0 // pred_check_branch
    %616 = sbr.rel (0) target = $region17
  $region16: #{_forward_impl.1} parent=0 // pred_region
    _
  $region17: #{_forward_impl.1} parent=0 // pred_fallthru
    _

</llo_original>
